<compile_context>
chip_gen: v7x
topology: tpu7x:2x2x1
jax: 0.10.0
libtpu: 0.0.40
codegen_flags: <defaults>
</compile_context>

<pallas_src>
import jax
import jax.numpy as jnp
from jax.experimental import pallas as pl
from jax.experimental.pallas import tpu as pltpu


def _make_disc_kernel(with_sbias: bool):
    """Kernel over one batch tile.

    sc1[b] = <h_pl[b], wc_row(b)> + bias (+ s_bias1[b])
    sc2[b] = <h_mi[b], wc_row(b)> + bias (+ s_bias2[b])
    where wc_row = c_x @ W.T was hoisted outside the kernel.
    """
    def kernel(*refs):
        if with_sbias:
            wc_ref, bias_ref, hpl_ref, hmi_ref, sb1_ref, sb2_ref, out_ref = refs
        else:
            wc_ref, bias_ref, hpl_ref, hmi_ref, out_ref = refs

        wc = wc_ref[...].astype(jnp.float32)        # (1, n_h) or (TB, n_h)
        b = bias_ref[0]                             # scalar bias from SMEM

        # VPU multiply + lane reduce, accumulate in f32 (bf16 operands OK,
        # no bf16 elementwise path needed -> safe on v5e as well).
        sc1 = jnp.sum(hpl_ref[...].astype(jnp.float32) * wc,
                      axis=-1, keepdims=True) + b   # (TB, 1)
        sc2 = jnp.sum(hmi_ref[...].astype(jnp.float32) * wc,
                      axis=-1, keepdims=True) + b   # (TB, 1)

        if with_sbias:
            sc1 = sc1 + sb1_ref[...].astype(jnp.float32)
            sc2 = sc2 + sb2_ref[...].astype(jnp.float32)

        # Write the two score columns directly (no in-kernel concatenate).
        out_ref[:, 0:1] = sc1.astype(out_ref.dtype)
        out_ref[:, 1:2] = sc2.astype(out_ref.dtype)

    return kernel


def discriminator_forward(c, h_pl, h_mi, W, bias,
                          s_bias1=None, s_bias2=None, *, block_b=512):
    """c: (1, n_h) or (B, n_h); h_pl, h_mi: (B, n_h); W: (n_h, n_h); bias: (1,)."""
    B, n_h = h_pl.shape
    out_dtype = jnp.float32

    # --- Rank-1 hoist: wc[r] = W @ c_x[r]  (c_x is the broadcast summary) ----
    c2 = jnp.reshape(jnp.asarray(c), (-1, n_h))
    if c2.shape[0] not in (1, B):
        raise ValueError("c must be broadcastable to h_pl (leading dim 1 or B)")
    wc = jnp.dot(c2.astype(jnp.float32),
                 jnp.asarray(W, jnp.float32).T)      # (1 or B, n_h), f32
    per_row_wc = wc.shape[0] != 1

    # --- Batch tiling (streaming, memory-bound) ------------------------------
    itemsize = jnp.dtype(h_pl.dtype).itemsize
    tb = block_b
    if B <= tb:
        tb = B                                      # single full-extent block
    else:
        # keep double-buffered h_pl+h_mi tiles comfortably inside v7x VMEM
        while tb > 8 and 4 * tb * n_h * itemsize > (32 << 20):
            tb //= 2
    num_blocks = -(-B // tb)
    pB = num_blocks * tb

    def _pad_rows(x, rows):
        if x.shape[0] == rows:
            return x
        pad = ((0, rows - x.shape[0]),) + ((0, 0),) * (x.ndim - 1)
        return jnp.pad(x, pad)

    h_pl_p = _pad_rows(h_pl, pB)
    h_mi_p = _pad_rows(h_mi, pB)
    bias_arr = jnp.reshape(jnp.asarray(bias, jnp.float32), (1,))

    with_sbias = (s_bias1 is not None) or (s_bias2 is not None)

    def _prep_sbias(sb):
        if sb is None:
            return jnp.zeros((pB, 1), jnp.float32)
        sb = jnp.asarray(sb, jnp.float32)
        if sb.size == B:
            sb = sb.reshape(B, 1)
        sb = jnp.broadcast_to(sb, (B, 1))
        return _pad_rows(sb, pB)

    if per_row_wc:
        wc_in = _pad_rows(wc, pB)
        wc_spec = pl.BlockSpec((tb, n_h), lambda i: (i, 0))
        wc_blk_rows = tb
    else:
        wc_in = wc
        wc_spec = pl.BlockSpec((1, n_h), lambda i: (0, 0))   # resident, reused
        wc_blk_rows = 1

    in_specs = [
        wc_spec,                                               # wc
        pl.BlockSpec(memory_space=pltpu.MemorySpace.SMEM),     # bias scalar
        pl.BlockSpec((tb, n_h), lambda i: (i, 0)),             # h_pl tile
        pl.BlockSpec((tb, n_h), lambda i: (i, 0)),             # h_mi tile
    ]
    args = [wc_in, bias_arr, h_pl_p, h_mi_p]
    if with_sbias:
        in_specs += [pl.BlockSpec((tb, 1), lambda i: (i, 0)),
                     pl.BlockSpec((tb, 1), lambda i: (i, 0))]
        args += [_prep_sbias(s_bias1), _prep_sbias(s_bias2)]

    # Explicit VMEM budget (double-buffered tiles + headroom), capped for v7x.
    blk_bytes = (2 * tb * n_h * itemsize          # h_pl + h_mi tiles
                 + wc_blk_rows * n_h * 4          # wc block
                 + tb * 2 * 4                     # output block
                 + (2 * tb * 4 if with_sbias else 0))
    vmem_limit = int(min(max(3 * blk_bytes, 4 << 20), 64 << 20))

    logits_p = pl.pallas_call(
        _make_disc_kernel(with_sbias),
        grid=(num_blocks,),
        in_specs=in_specs,
        out_specs=pl.BlockSpec((tb, 2), lambda i: (i, 0)),
        out_shape=jax.ShapeDtypeStruct((pB, 2), out_dtype),
        compiler_params=pltpu.CompilerParams(
            dimension_semantics=("parallel",),   # batch tiles -> both v7x TCs
            vmem_limit_bytes=vmem_limit,
        ),
    )(*args)

    return logits_p[:B]


def init_params(key, n_h):
    """Synthetic init matching nn.Bilinear(n_h, n_h, 1) + xavier_uniform_."""
    # xavier_uniform_ on weight (1, n_h, n_h): fan_in = n_h*n_h, fan_out = n_h
    bound = (6.0 / (n_h * n_h + n_h)) ** 0.5
    W = jax.random.uniform(key, (n_h, n_h), jnp.float32, minval=-bound, maxval=bound)
    bias = jnp.zeros((1,), jnp.float32)   # bias.data.fill_(0.0)
    return W, bias


if __name__ == "__main__":
    n_h = 32
    B = 8

    key = jax.random.PRNGKey(0)
    k_w, k_c, k_pl, k_mi, k_b1, k_b2 = jax.random.split(key, 6)

    W, bias = init_params(k_w, n_h)
    c = jax.random.normal(k_c, (1, n_h), jnp.float32)       # summary vector
    h_pl = jax.random.normal(k_pl, (B, n_h), jnp.float32)   # positive samples
    h_mi = jax.random.normal(k_mi, (B, n_h), jnp.float32)   # negative samples

    logits = discriminator_forward(c, h_pl, h_mi, W, bias)
    logits = jax.block_until_ready(logits)

    # Pure-JAX reference of the bilinear form.
    c_x = jnp.broadcast_to(c, h_pl.shape)
    ref1 = jnp.einsum('bi,ij,bj->b', h_pl, W, c_x)[:, None] + bias[0]
    ref2 = jnp.einsum('bi,ij,bj->b', h_mi, W, c_x)[:, None] + bias[0]
    ref = jnp.concatenate([ref1, ref2], axis=1)
    assert logits.shape == (B, 2)
    assert jnp.allclose(logits, ref, atol=1e-4, rtol=1e-4)

    # Exercise the fused s_bias path as well.
    s1 = jax.random.normal(k_b1, (B, 1), jnp.float32)
    s2 = jax.random.normal(k_b2, (B, 1), jnp.float32)
    logits_b = jax.block_until_ready(
        discriminator_forward(c, h_pl, h_mi, W, bias, s1, s2))
    ref_b = ref + jnp.concatenate([s1, s2], axis=1)
    assert jnp.allclose(logits_b, ref_b, atol=1e-4, rtol=1e-4)

    print("KERNEL_OK")
</pallas_src>

<mosaic_0001>
module attributes {stable_mosaic.version = 11 : i64} {
  func.func @kernel(%arg0: i32, %arg1: memref<1x32xf32, #tpu.memory_space<vmem>>, %arg2: memref<1xf32, #tpu.memory_space<smem>>, %arg3: memref<8x32xf32, #tpu.memory_space<vmem>>, %arg4: memref<8x32xf32, #tpu.memory_space<vmem>>, %arg5: memref<8x2xf32, #tpu.memory_space<vmem>>) attributes {dimension_semantics = [#tpu.dimension_semantics<parallel>], iteration_bounds = array<i64: 1>, scalar_prefetch = 0 : i64, scratch_operands = 0 : i64, tpu.core_type = #tpu.core_type<tc>, window_params = [{pipeline_mode = #tpu.pipeline_mode<synchronous>, transform_indices = @transform_0, window_bounds = array<i64: 1, 32>}, {transform_indices = @transform_1, window_bounds = array<i64: 1>}, {transform_indices = @transform_2, window_bounds = array<i64: 8, 32>}, {transform_indices = @transform_3, window_bounds = array<i64: 8, 32>}, {transform_indices = @transform_4, window_bounds = array<i64: 8, 2>}]} {
    %c0 = arith.constant 0 : index
    %c0_0 = arith.constant 0 : index
    %0 = vector.load %arg1[%c0, %c0_0] : memref<1x32xf32, #tpu.memory_space<vmem>>, vector<1x32xf32>
    %c0_1 = arith.constant 0 : index
    %1 = memref.load %arg2[%c0_1] : memref<1xf32, #tpu.memory_space<smem>>
    %c0_2 = arith.constant 0 : index
    %c0_3 = arith.constant 0 : index
    %2 = vector.load %arg3[%c0_2, %c0_3] : memref<8x32xf32, #tpu.memory_space<vmem>>, vector<8x32xf32>
    %3 = vector.broadcast %0 : vector<1x32xf32> to vector<8x32xf32>
    %4 = arith.mulf %2, %3 : vector<8x32xf32>
    %cst = arith.constant dense<0.000000e+00> : vector<8xf32>
    %5 = vector.multi_reduction <add>, %4, %cst [1] : vector<8x32xf32> to vector<8xf32>
    %6 = vector.shape_cast %5 : vector<8xf32> to vector<8x1xf32>
    %7 = vector.broadcast %1 : f32 to vector<8x1xf32>
    %8 = arith.addf %6, %7 : vector<8x1xf32>
    %c0_4 = arith.constant 0 : index
    %c0_5 = arith.constant 0 : index
    %9 = vector.load %arg4[%c0_4, %c0_5] : memref<8x32xf32, #tpu.memory_space<vmem>>, vector<8x32xf32>
    %10 = vector.broadcast %0 : vector<1x32xf32> to vector<8x32xf32>
    %11 = arith.mulf %9, %10 : vector<8x32xf32>
    %cst_6 = arith.constant dense<0.000000e+00> : vector<8xf32>
    %12 = vector.multi_reduction <add>, %11, %cst_6 [1] : vector<8x32xf32> to vector<8xf32>
    %13 = vector.shape_cast %12 : vector<8xf32> to vector<8x1xf32>
    %14 = vector.broadcast %1 : f32 to vector<8x1xf32>
    %15 = arith.addf %13, %14 : vector<8x1xf32>
    %c0_7 = arith.constant 0 : index
    %c0_8 = arith.constant 0 : index
    %16 = vector.load %arg5[%c0_7, %c0_8] : memref<8x2xf32, #tpu.memory_space<vmem>>, vector<8x1xf32>
    tpu.vector_store %arg5[%c0_7, %c0_8], %8 {strides = array<i32>} : memref<8x2xf32, #tpu.memory_space<vmem>>, vector<8x1xf32>,
    %c0_9 = arith.constant 0 : index
    %c1 = arith.constant 1 : index
    %17 = vector.load %arg5[%c0_9, %c1] : memref<8x2xf32, #tpu.memory_space<vmem>>, vector<8x1xf32>
    tpu.vector_store %arg5[%c0_9, %c1], %15 {strides = array<i32>} : memref<8x2xf32, #tpu.memory_space<vmem>>, vector<8x1xf32>,
    return
  }
  func.func @transform_0(%arg0: i32) -> (i32, i32) {
    %c0_i32 = arith.constant 0 : i32
    %c0_i32_0 = arith.constant 0 : i32
    %c0_i32_1 = arith.constant 0 : i32
    return %c0_i32, %c0_i32_0 : i32, i32
  }
  func.func @transform_1(%arg0: i32) -> i32 {
    %c0_i32 = arith.constant 0 : i32
    %c0_i32_0 = arith.constant 0 : i32
    return %c0_i32 : i32
  }
  func.func @transform_2(%arg0: i32) -> (i32, i32) {
    %c0_i32 = arith.constant 0 : i32
    %c0_i32_0 = arith.constant 0 : i32
    return %arg0, %c0_i32 : i32, i32
  }
  func.func @transform_3(%arg0: i32) -> (i32, i32) {
    %c0_i32 = arith.constant 0 : i32
    %c0_i32_0 = arith.constant 0 : i32
    return %arg0, %c0_i32 : i32, i32
  }
  func.func @transform_4(%arg0: i32) -> (i32, i32) {
    %c0_i32 = arith.constant 0 : i32
    %c0_i32_0 = arith.constant 0 : i32
    return %arg0, %c0_i32 : i32, i32
  }
}

</mosaic_0001>

<llo_original>
// kernel: tpu_custom_call.1
$region0: #{tpu_custom_call.1}
  #allocation0 [shape = 'u32[]', space=smem, size = 0x4, offset = 0x4, fixed_abs, tag = 'smem constant byte address 0x4 - core index']
  #allocation1 [shape = 'u32[144,128]{1,0:T(1,128)}', space=vmem, size = 0x12000, scoped, tag = 'internal scratch']
  #allocation2 [shape = 'f32[1]{0:T(128)S(6)}', space=smem, size = 0x200, scoped, tag = 'scoped memory for tpu_custom_call.1']
  %s0 = inlined_call_operand.vmem [shape: f32[1,32], index: 0, kind: input, shape index: {}]
  %s1 = inlined_call_operand.<no memory space> [shape: f32[1], index: 1, kind: input, shape index: {}]
  %s2 = inlined_call_operand.hbm [shape: f32[8,32], index: 2, kind: input, shape index: {}]
  %s3 = inlined_call_operand.vmem [shape: f32[8,32], index: 3, kind: input, shape index: {}]
  %s4 = inlined_call_operand.vmem [shape: f32[8,2], index: 4, kind: output, shape index: {}]
  %s5 = sld [smem:[#allocation0]]
  $region30: #{tpu_custom_call.1} parent=0
    _
  %s7 = ssub.s32 1, %s5
  %s8 = scalar_select 0, %s7, %s5
  %9 = sst [smem:[#allocation2]] %s1
  $region1: #{tpu_custom_call.1} parent=0
    #allocation3 [shape = 'u8[4096]{0}', space=vmem, size = 0x1000, scoped, tag = 'input window, operand 2, single buffered']
    #allocation4 [shape = 's32[1]{0}', space=sflag, size = 0x4, scoped, tag = 'scoped memory for tpu_custom_call.1']
    %10 = vsyncpa [#allocation4], 0
    // Predicated region
    $region2: #{tpu_custom_call.1} parent=1 // pred_check
      _
    $region3: #{tpu_custom_call.1} parent=1 // pred_check_branch
      %12 = sbr.rel (0) target = $region5
    $region4: #{tpu_custom_call.1} parent=1 // pred_region
      _
    $region5: #{tpu_custom_call.1} parent=1 // pred_fallthru
      _
    // Predicated region
    $region6: #{tpu_custom_call.1} parent=1 // pred_check
      _
    $region7: #{tpu_custom_call.1} parent=1 // pred_check_branch
      %14 = sbr.rel (0) target = $region9
    $region8: #{tpu_custom_call.1} parent=1 // pred_region
      _
    $region9: #{tpu_custom_call.1} parent=1 // pred_fallthru
      _
    // Predicated region
    $region10: #{tpu_custom_call.1} parent=1 // pred_check
      _
    $region11: #{tpu_custom_call.1} parent=1 // pred_check_branch
      %16 = sbr.rel (0) target = $region13
    $region12: #{tpu_custom_call.1} parent=1 // pred_region
      %s18 = ssub.s32 128, 128
      %19 = vsyncadd [#allocation4], %s18
      %s21 = sshll.u32 [#allocation3], 4
      %s22 = int_to_ptr.vmem [resolvable:$true] %s21
      %24 = dma.hbm_to_vmem [thread:$0]  %s2, 128, %s22, [#allocation4]
    $region13: #{tpu_custom_call.1} parent=1 // pred_fallthru
      _
    // Predicated region
    $region14: #{tpu_custom_call.1} parent=1 // pred_check
      _
    $region15: #{tpu_custom_call.1} parent=1 // pred_check_branch
      %26 = sbr.rel (0) target = $region17
    $region16: #{tpu_custom_call.1} parent=1 // pred_region
      _
    $region17: #{tpu_custom_call.1} parent=1 // pred_fallthru
      _
    // Predicated region
    $region18: #{tpu_custom_call.1} parent=1 // pred_check
      _
    $region19: #{tpu_custom_call.1} parent=1 // pred_check_branch
      %28 = sbr.rel (0) target = $region21
    $region20: #{tpu_custom_call.1} parent=1 // pred_region
      %29 = dma.done [#allocation4], 128
    $region21: #{tpu_custom_call.1} parent=1 // pred_fallthru
      _
    %v30 = vld [vmem:[%s0] sm:$0x1]
    %s31 = sld [smem:[#allocation2]]
    %v32 = vld [vmem:[#allocation3] sm:$0xff]
    %v34 = vlaneseq
    %v35 = vshrl.u32 %v34, 7
    %v36 = vsub.s32 0, %v35
    %v37 = vrot.slane %v30, %v36
    %v39 = vmul.f32 %v32, %v37
    %vm40 = vcmask 261120
    %v41 = vsel %vm40, %v39, 0.0
    %42 = vadd.xlane.f32.xlu0 %v41
    %v43 = vpop.xlane.xlu0 %42
    %v44 = vstv %s31
    %v45 = vadd.f32 %v43, %v44
    %v46 = vld [vmem:[%s3] sm:$0xff]
    %v47 = vmul.f32 %v46, %v37
    %v48 = vsel %vm40, %v47, 0.0
    %49 = vadd.xlane.f32.xlu0 %v48
    %v50 = vpop.xlane.xlu0 %49
    %v51 = vadd.f32 %v50, %v44
    %vm52 = vcmask 7168
    %53 = vst.msk [vmem:[%s4] sm:$0xff] %vm52, %v45
    %vm54 = vcmask 15368
    %55 = vst.msk [vmem:[%s4] sm:$0xff] %vm54, %v51
    // Predicated region
    $region22: #{tpu_custom_call.1} parent=1 // pred_check
      _
    $region23: #{tpu_custom_call.1} parent=1 // pred_check_branch
      %57 = sbr.rel (0) target = $region25
    $region24: #{tpu_custom_call.1} parent=1 // pred_region
      _
    $region25: #{tpu_custom_call.1} parent=1 // pred_fallthru
      _
    // Predicated region
    $region26: #{tpu_custom_call.1} parent=1 // pred_check
      _
    $region27: #{tpu_custom_call.1} parent=1 // pred_check_branch
      %59 = sbr.rel (0) target = $region29
    $region28: #{tpu_custom_call.1} parent=1 // pred_region
      _
    $region29: #{tpu_custom_call.1} parent=1 // pred_fallthru
      _
    %60 = vsyncpa [#allocation4], 1

</llo_original>
